<compile_context>
chip_gen: v7x
topology: tpu7x:2x2x1
jax: 0.10.0
libtpu: 0.0.40
codegen_flags: <defaults>
</compile_context>

<pallas_src>
import jax
import jax.numpy as jnp
from jax.experimental import pallas as pl
from jax.experimental.pallas import tpu as pltpu

_LANE = 128
_MAX_BLOCK_BYTES = 2 * 1024 * 1024   # per-buffer block cap (2 MiB)
_SMALL_INPUT_BYTES = 256 * 1024      # below this, plain XLA fusion wins
_POW = 2.30258509
_EPS = 1e-06
_LN2 = 0.6931471805599453


def _scaled_sigmoid_kernel(x_ref, o_ref):
    # 2*sigmoid(x)**p + eps == exp(ln2 - p*softplus(-x)) + eps
    # softplus(-x) = max(-x, 0) + log1p(exp(-|x|))   (numerically stable)
    x = x_ref[...].astype(jnp.float32)
    softplus_neg_x = jnp.maximum(-x, 0.0) + jnp.log1p(jnp.exp(-jnp.abs(x)))
    y = jnp.exp(_LN2 - _POW * softplus_neg_x) + _EPS
    o_ref[...] = y.astype(o_ref.dtype)


def _scaled_sigmoid_ref(x):
    xf = x.astype(jnp.float32)
    return (2.0 * jax.nn.sigmoid(xf) ** _POW + _EPS).astype(x.dtype)


def _pick_block_rows(rows, sublane, itemsize):
    """Sublane-aligned row block, <= 2 MiB/buffer, aiming for ~8 grid steps
    (>= 4 per core on a v7x megacore) with an even step count when cheap."""
    max_block_rows = max(sublane, _MAX_BLOCK_BYTES // (_LANE * itemsize))
    if rows <= sublane:
        return rows                      # block == full array dims (always legal)
    best = None
    for k in (8, 9, 10, 11, 12):         # prefer ~8, even number of steps
        target = sublane * pl.cdiv(pl.cdiv(rows, k), sublane)
        block = min(max_block_rows, max(sublane, target))
        steps = pl.cdiv(rows, block)
        if best is None:
            best = block
        if steps % 2 == 0:
            return block
        if block == max_block_rows:      # clamped: larger k changes nothing
            break
    return best


def _run_kernel_2d(x2d):
    """Run the kernel on a lane-dense (rows, 128) array."""
    rows, _ = x2d.shape
    itemsize = jnp.dtype(x2d.dtype).itemsize
    sublane = max(8, 32 // itemsize)     # native sublane tile: 8 f32 / 16 bf16
    block_rows = _pick_block_rows(rows, sublane, itemsize)
    grid = (pl.cdiv(rows, block_rows),)  # ragged last row-block is masked by Pallas
    n_elems = rows * _LANE

    return pl.pallas_call(
        _scaled_sigmoid_kernel,
        out_shape=jax.ShapeDtypeStruct((rows, _LANE), x2d.dtype),
        grid=grid,
        in_specs=[pl.BlockSpec((block_rows, _LANE), lambda i: (i, 0))],
        out_specs=pl.BlockSpec((block_rows, _LANE), lambda i: (i, 0)),
        compiler_params=pltpu.CompilerParams(
            # On v7x (2 TCs/chip) the "parallel" axis is sharded across both
            # cores; on single-TC v5e/v6e it is a no-op.
            dimension_semantics=("parallel",),
        ),
        cost_estimate=pl.CostEstimate(
            flops=6 * n_elems,
            transcendentals=3 * n_elems,
            bytes_accessed=2 * n_elems * itemsize,
        ),
    )(x2d)


def scaled_sigmoid(x, *, force_kernel=False):
    """Elementwise scaled sigmoid: 2*sigmoid(x)**2.30258509 + 1e-6. Any shape."""
    orig_shape = x.shape
    n = x.size
    if n == 0:
        return x
    itemsize = jnp.dtype(x.dtype).itemsize

    # Small-input fast path: pallas_call launch + DMA setup dwarfs the work.
    if (not force_kernel and n * itemsize < _SMALL_INPUT_BYTES) or n < _LANE:
        return _scaled_sigmoid_ref(x)

    if n % _LANE == 0:
        # Zero-copy: flatten to a lane-dense (rows, 128) view (bitcast reshape).
        return _run_kernel_2d(x.reshape(-1, _LANE)).reshape(orig_shape)

    # Lane-unaligned: kernel on the 128-aligned prefix, XLA for the <128-elem
    # tail.  No full-array jnp.pad before the kernel, no full [:n] slice after.
    flat = x.reshape(-1)
    m = (n // _LANE) * _LANE
    main_out = _run_kernel_2d(flat[:m].reshape(-1, _LANE)).reshape(-1)
    tail_out = _scaled_sigmoid_ref(flat[m:])
    return jnp.concatenate([main_out, tail_out]).reshape(orig_shape)


if __name__ == "__main__":
    key = jax.random.PRNGKey(0)
    x = jax.random.normal(key, (2, 4, 16, 16), dtype=jnp.float32)  # NCHW-like

    # Force the Pallas kernel path (input is small, auto path would bypass).
    y_kernel = jax.block_until_ready(scaled_sigmoid(x, force_kernel=True))
    ref = 2.0 * jax.nn.sigmoid(x) ** _POW + _EPS
    assert y_kernel.shape == x.shape and y_kernel.dtype == x.dtype
    assert jnp.allclose(y_kernel, ref, atol=1e-5, rtol=1e-5)

    # Auto path (small-input XLA fast path).
    y_auto = jax.block_until_ready(scaled_sigmoid(x))
    assert jnp.allclose(y_auto, ref, atol=1e-5, rtol=1e-5)

    # Larger, lane-unaligned input: exercises the aligned-prefix kernel + XLA
    # tail path and the ragged last row-block in the grid.
    x2 = jax.random.normal(jax.random.PRNGKey(1), (3, 5, 37, 129), dtype=jnp.float32)
    y2 = jax.block_until_ready(scaled_sigmoid(x2))
    ref2 = 2.0 * jax.nn.sigmoid(x2) ** _POW + _EPS
    assert y2.shape == x2.shape and y2.dtype == x2.dtype
    assert jnp.allclose(y2, ref2, atol=1e-5, rtol=1e-5)

    print("KERNEL_OK")
</pallas_src>

<mosaic_0001>
module attributes {stable_mosaic.version = 11 : i64} {
  func.func @_scaled_sigmoid_kernel(%arg0: i32, %arg1: memref<8x128xf32, #tpu.memory_space<vmem>>, %arg2: memref<8x128xf32, #tpu.memory_space<vmem>>) attributes {dimension_semantics = [#tpu.dimension_semantics<parallel>], iteration_bounds = array<i64: 2>, scalar_prefetch = 0 : i64, scratch_operands = 0 : i64, tpu.core_type = #tpu.core_type<tc>, window_params = [{transform_indices = @transform_0, window_bounds = array<i64: 8, 128>}, {transform_indices = @transform_1, window_bounds = array<i64: 8, 128>}]} {
    %c0 = arith.constant 0 : index
    %c0_0 = arith.constant 0 : index
    %0 = vector.load %arg1[%c0, %c0_0] : memref<8x128xf32, #tpu.memory_space<vmem>>, vector<8x128xf32>
    %cst = arith.constant 0.000000e+00 : f32
    %1 = vector.broadcast %cst : f32 to vector<8x128xf32>
    %2 = arith.subf %1, %0 : vector<8x128xf32>
    %cst_1 = arith.constant 0.000000e+00 : f32
    %3 = vector.broadcast %cst_1 : f32 to vector<8x128xf32>
    %4 = arith.maximumf %2, %3 : vector<8x128xf32>
    %5 = math.absf %0 : vector<8x128xf32>
    %cst_2 = arith.constant 0.000000e+00 : f32
    %6 = vector.broadcast %cst_2 : f32 to vector<8x128xf32>
    %7 = arith.subf %6, %5 : vector<8x128xf32>
    %8 = math.exp %7 : vector<8x128xf32>
    %9 = math.log1p %8 : vector<8x128xf32>
    %10 = arith.addf %4, %9 : vector<8x128xf32>
    %cst_3 = arith.constant 2.30258512 : f32
    %11 = vector.broadcast %cst_3 : f32 to vector<8x128xf32>
    %12 = arith.mulf %11, %10 : vector<8x128xf32>
    %cst_4 = arith.constant 0.693147182 : f32
    %13 = vector.broadcast %cst_4 : f32 to vector<8x128xf32>
    %14 = arith.subf %13, %12 : vector<8x128xf32>
    %15 = math.exp %14 : vector<8x128xf32>
    %cst_5 = arith.constant 9.99999997E-7 : f32
    %16 = vector.broadcast %cst_5 : f32 to vector<8x128xf32>
    %17 = arith.addf %15, %16 : vector<8x128xf32>
    %c0_6 = arith.constant 0 : index
    %c0_7 = arith.constant 0 : index
    %18 = vector.load %arg2[%c0_6, %c0_7] : memref<8x128xf32, #tpu.memory_space<vmem>>, vector<8x128xf32>
    tpu.vector_store %arg2[%c0_6, %c0_7], %17 {strides = array<i32>} : memref<8x128xf32, #tpu.memory_space<vmem>>, vector<8x128xf32>,
    return
  }
  func.func @transform_0(%arg0: i32) -> (i32, i32) {
    %c0_i32 = arith.constant 0 : i32
    %c0_i32_0 = arith.constant 0 : i32
    return %arg0, %c0_i32 : i32, i32
  }
  func.func @transform_1(%arg0: i32) -> (i32, i32) {
    %c0_i32 = arith.constant 0 : i32
    %c0_i32_0 = arith.constant 0 : i32
    return %arg0, %c0_i32 : i32, i32
  }
}

</mosaic_0001>

<llo_original>
// kernel: tpu_custom_call.1
$region0: #{tpu_custom_call.1}
  #allocation0 [shape = 'u32[]', space=smem, size = 0x4, offset = 0x4, fixed_abs, tag = 'smem constant byte address 0x4 - core index']
  #allocation1 [shape = 'u32[144,128]{1,0:T(1,128)}', space=vmem, size = 0x12000, scoped, tag = 'internal scratch']
  %s0 = inlined_call_operand.hbm [shape: f32[16,128], index: 0, kind: input, shape index: {}]
  %s1 = inlined_call_operand.hbm [shape: f32[16,128], index: 1, kind: output, shape index: {}]
  %s2 = sld [smem:[#allocation0]]
  $region41: #{tpu_custom_call.1} parent=0
    _
  %s4 = ssub.s32 1, %s2
  %s5 = scalar_select 0, %s4, %s2
  $region1: #{tpu_custom_call.1} parent=0
    #allocation2 [shape = 'u8[8192]{0}', space=vmem, size = 0x2000, scoped, tag = 'input window, operand 0']
    #allocation3 [shape = 's32[2]{0}', space=sflag, size = 0x8, scoped, tag = 'scoped memory for tpu_custom_call.1']
    #allocation4 [shape = 's32[2]{0}', space=sflag, size = 0x8, scoped, tag = 'scoped memory for tpu_custom_call.1']
    #allocation5 [shape = 'u8[8192]{0}', space=vmem, size = 0x2000, scoped, tag = 'output window, operand 0']
    %6 = vsyncpa [#allocation3], 0
    %s7 = scalar_lea.sflag [#allocation3], 1
    %8 = vsyncpa %s7, 0
    %9 = vsyncpa [#allocation4], 0
    %s10 = scalar_lea.sflag [#allocation4], 1
    %11 = vsyncpa %s10, 0
    loop: start=0, step=1, limit=4
    $region2: #{tpu_custom_call.1} parent=1 // loop_pre_header
      _
    $region3: #{tpu_custom_call.1} parent=1 // loop_header
      %s13 = sphi 0, %s17
      %p14 = scmp.ge.s32.totalorder %s13, 4
      %s23 = sphi 0, %s25
      %s26 = sphi 0, %s23
      %s27 = sphi 0, %s26
      %s43 = sphi 0, %s27
      %s49 = sphi 0, %s51
      %s52 = sphi 0, %s49
      %s53 = sphi 0, %s52
      %s69 = sphi 0, %s53
    $region4: #{tpu_custom_call.1} parent=1 // loop_header_branch
      %16 = sbr.rel (%p14) target = $region8
    $region5: #{tpu_custom_call.1} parent=1 // loop_body
      %s18 = ssub.s32 %s13, 1
      %s19 = ssub.s32 %s13, 2
      %s20 = sadd.s32 %s13, 1
      %s21 = ssub.s32 %s13, %s20
      %p22 = scmp.eq.s32.totalorder %s21, 0
      %s24 = sadd.s32 %s23, 1
      %s25 = scalar_select %p22, %s23, %s24
      %p28 = pneg %p22
      %p29 = scmp.eq.s32.totalorder %s13, 1
      %p30 = por %p28, %p29
      %p31 = scmp.ne.s32.totalorder %s23, %s26
      %p32 = scmp.eq.s32.totalorder %s13, 0
      %p33 = por %p31, %p32
      %p34 = scmp.ne.s32.totalorder %s23, %s26
      %p35 = scmp.eq.s32.totalorder %s18, 1
      %p36 = por %p34, %p35
      %p37 = scmp.ne.s32.totalorder %s26, %s27
      %p38 = scmp.eq.s32.totalorder %s18, 0
      %p39 = por %p37, %p38
      %p40 = scmp.ne.s32.totalorder %s26, %s27
      %p41 = scmp.eq.s32.totalorder %s19, 1
      %p42 = por %p40, %p41
      %p44 = scmp.ne.s32.totalorder %s27, %s43
      %p45 = scmp.eq.s32.totalorder %s19, 0
      %p46 = por %p44, %p45
      %s47 = ssub.s32 %s13, %s20
      %p48 = scmp.eq.s32.totalorder %s47, 0
      %s50 = sadd.s32 %s49, 1
      %s51 = scalar_select %p48, %s49, %s50
      %p54 = pneg %p48
      %p55 = scmp.eq.s32.totalorder %s13, 1
      %p56 = por %p54, %p55
      %p57 = scmp.ne.s32.totalorder %s49, %s52
      %p58 = scmp.eq.s32.totalorder %s13, 0
      %p59 = por %p57, %p58
      %p60 = scmp.ne.s32.totalorder %s49, %s52
      %p61 = scmp.eq.s32.totalorder %s18, 1
      %p62 = por %p60, %p61
      %p63 = scmp.ne.s32.totalorder %s52, %s53
      %p64 = scmp.eq.s32.totalorder %s18, 0
      %p65 = por %p63, %p64
      %p66 = scmp.ne.s32.totalorder %s52, %s53
      %p67 = scmp.eq.s32.totalorder %s19, 1
      %p68 = por %p66, %p67
      %p70 = scmp.ne.s32.totalorder %s53, %s69
      %p71 = scmp.eq.s32.totalorder %s19, 0
      %p72 = por %p70, %p71
      %p73 = scmp.le.s32.totalorder 1, %s13
      %p74 = scmp.lt.s32.totalorder %s13, 3
      %p75 = pnand %p73, %p74
      %p76 = pneg %p75
      // Predicated region
      $region9: #{tpu_custom_call.1} parent=5 // pred_check
        _
      $region10: #{tpu_custom_call.1} parent=5 // pred_check_branch
        %78 = sbr.rel (%p75) target = $region12
      $region11: #{tpu_custom_call.1} parent=5 // pred_region
        %s79 = ssub.s32 %s13, 1
      $region12: #{tpu_custom_call.1} parent=5 // pred_fallthru
        _
      %p80 = scmp.lt.s32.totalorder %s13, 2
      // Predicated region
      $region13: #{tpu_custom_call.1} parent=5 // pred_check
        %p81 = pneg %p80
      $region14: #{tpu_custom_call.1} parent=5 // pred_check_branch
        %83 = sbr.rel (%p81) target = $region16
      $region15: #{tpu_custom_call.1} parent=5 // pred_region
        // Predicated region
        $region17: #{tpu_custom_call.1} parent=15 // pred_check
          %p84 = pneg %p33
        $region18: #{tpu_custom_call.1} parent=15 // pred_check_branch
          %86 = sbr.rel (%p84) target = $region20
        $region19: #{tpu_custom_call.1} parent=15 // pred_region
          %s87 = sand.u32 %s23, 1
          %s88 = scalar_lea.sflag [#allocation3], %s87
          %s89 = sand.u32 %s23, 1
          %s90 = smul.addr %s89, 8
          %s91 = scalar_lea.vmem [#allocation2], %s90
          %s93 = ssub.s32 128, 128
          %94 = vsyncadd %s88, %s93
          %s95 = smul.addr %s13, 128
          %s96 = scalar_lea.hbm %s0, %s95
          %s98 = sshll.u32 %s91, 4
          %s99 = int_to_ptr.vmem [resolvable:$true] %s98
          %101 = dma.hbm_to_vmem [thread:$0]  %s96, 128, %s99, %s88
        $region20: #{tpu_custom_call.1} parent=15 // pred_fallthru
          _
      $region16: #{tpu_custom_call.1} parent=5 // pred_fallthru
        _
      %p102 = scmp.le.s32.totalorder 1, %s13
      %p103 = scmp.lt.s32.totalorder %s13, 3
      %p104 = pnand %p102, %p103
      %p105 = pneg %p104
      // Predicated region
      $region21: #{tpu_custom_call.1} parent=5 // pred_check
        _
      $region22: #{tpu_custom_call.1} parent=5 // pred_check_branch
        %107 = sbr.rel (%p104) target = $region24
      $region23: #{tpu_custom_call.1} parent=5 // pred_region
        %s108 = ssub.s32 %s13, 1
        %s109 = sand.u32 %s26, 1
        %s110 = scalar_lea.sflag [#allocation3], %s109
        %s111 = sand.u32 %s26, 1
        %s112 = smul.addr %s111, 8
        %s113 = scalar_lea.vmem [#allocation2], %s112
        // Predicated region
        $region25: #{tpu_custom_call.1} parent=23 // pred_check
          %p114 = pneg %p39
        $region26: #{tpu_custom_call.1} parent=23 // pred_check_branch
          %116 = sbr.rel (%p114) target = $region28
        $region27: #{tpu_custom_call.1} parent=23 // pred_region
          %117 = dma.done %s110, 128
        $region28: #{tpu_custom_call.1} parent=23 // pred_fallthru
          _
        %s118 = sand.u32 %s26, 1
        %s119 = scalar_lea.sflag [#allocation3], %s118
        %s120 = sand.u32 %s26, 1
        %s121 = smul.addr %s120, 8
        %s122 = scalar_lea.vmem [#allocation2], %s121
        %p123 = pneg %p39
        %p124 = pneg %p36
        %p125 = pneg %p65
        %p126 = pneg %p62
        %s127 = sand.u32 %s52, 1
        %s128 = scalar_lea.sflag [#allocation4], %s127
        %s129 = sand.u32 %s52, 1
        %s130 = smul.addr %s129, 8
        %s131 = scalar_lea.vmem [#allocation5], %s130
        %v132 = vld [vmem:[%s113] sm:$0xff]
        %v133 = vsub.f32 0.0, %v132
        %v134 = vmax.f32 %v133, 0.0
        %v135 = vand.u32 2147483647, %v132
        %v136 = vsub.f32 0.0, %v135
        %v137 = vmul.f32 %v136, 1.442695
        %v138 = vpow.pop %v137
        %v139 = vadd.f32 %v138, 1.0
        %v140 = vlog2.pop %v139
        %v141 = vmul.f32 %v140, 0.6931472
        %v142 = vmul.f32 -0.5, %v138
        %v143 = vadd.f32 %v142, 1.0
        %v144 = vmul.f32 %v143, %v138
        %v145 = vand.u32 2147483647, %v138
        %vm146 = vcmp.lt.f32.partialorder %v145, 0.0004427343
        %v147 = vsel %vm146, %v144, %v141
        %v148 = vadd.f32 %v134, %v147
        %v149 = vmul.f32 %v148, 2.3025851
        %v150 = vsub.f32 0.6931472, %v149
        %v151 = vmul.f32 %v150, 1.442695
        %v152 = vpow.pop %v151
        %v153 = vadd.f32 %v152, 1e-06
        %154 = vst [vmem:[%s131] sm:$0xff] %v153
        %s155 = sand.u32 %s52, 1
        %s156 = scalar_lea.sflag [#allocation4], %s155
        %s157 = sand.u32 %s52, 1
        %s158 = smul.addr %s157, 8
        %s159 = scalar_lea.vmem [#allocation5], %s158
        // Predicated region
        $region29: #{tpu_custom_call.1} parent=23 // pred_check
          %p160 = pneg %p62
        $region30: #{tpu_custom_call.1} parent=23 // pred_check_branch
          %162 = sbr.rel (%p160) target = $region32
        $region31: #{tpu_custom_call.1} parent=23 // pred_region
          %s164 = ssub.s32 128, 128
          %165 = vsyncadd %s156, %s164
          %s166 = smul.addr %s18, 128
          %s167 = scalar_lea.hbm %s1, %s166
          %s169 = sshll.u32 %s159, 4
          %s170 = int_to_ptr.vmem [resolvable:$true] %s169
          %172 = dma.vmem_to_hbm [thread:$0]  %s170, 128, %s167, %s156
        $region32: #{tpu_custom_call.1} parent=23 // pred_fallthru
          _
      $region24: #{tpu_custom_call.1} parent=5 // pred_fallthru
        _
      %p173 = scmp.le.s32.totalorder 2, %s13
      // Predicated region
      $region33: #{tpu_custom_call.1} parent=5 // pred_check
        %p174 = pneg %p173
      $region34: #{tpu_custom_call.1} parent=5 // pred_check_branch
        %176 = sbr.rel (%p174) target = $region36
      $region35: #{tpu_custom_call.1} parent=5 // pred_region
        %s177 = ssub.s32 %s13, 2
        // Predicated region
        $region37: #{tpu_custom_call.1} parent=35 // pred_check
          %p178 = pneg %p68
        $region38: #{tpu_custom_call.1} parent=35 // pred_check_branch
          %180 = sbr.rel (%p178) target = $region40
        $region39: #{tpu_custom_call.1} parent=35 // pred_region
          %s181 = sand.u32 %s53, 1
          %s182 = scalar_lea.sflag [#allocation4], %s181
          %s183 = sand.u32 %s53, 1
          %s184 = smul.addr %s183, 8
          %s185 = scalar_lea.vmem [#allocation5], %s184
          %186 = dma.done %s182, 128
        $region40: #{tpu_custom_call.1} parent=35 // pred_fallthru
          _
      $region36: #{tpu_custom_call.1} parent=5 // pred_fallthru
        _
    $region6: #{tpu_custom_call.1} parent=1 // loop_footer
      %s17 = sadd.s32 1, %s13
    $region7: #{tpu_custom_call.1} parent=1 // loop_footer_branch
      %12 = sbr.rel target = $region3
    $region8: #{tpu_custom_call.1} parent=1 // loop_exit
      _
    %187 = vsyncpa [#allocation3], 1
    %s188 = scalar_lea.sflag [#allocation3], 1
    %189 = vsyncpa %s188, 1
    %190 = vsyncpa [#allocation4], 1
    %s191 = scalar_lea.sflag [#allocation4], 1
    %192 = vsyncpa %s191, 1

</llo_original>
